<compile_context>
chip_gen: v7x
topology: tpu7x:2x2x1
jax: 0.10.0
libtpu: 0.0.40
codegen_flags: <defaults>
</compile_context>

<pallas_src>
import functools

import jax
import jax.numpy as jnp
from jax import lax
from jax.experimental import pallas as pl
from jax.experimental.pallas import tpu as pltpu


_VMEM_LIMIT = 48 * 1024 * 1024    # explicit scoped-VMEM limit (safe on v5e/v6e/v7x)
_VMEM_BUDGET = 24 * 1024 * 1024   # planning budget used by the block-size pickers


# ---------------------------------------------------------------------------
# Kernel 1: ConvTranspose3d(k=2, s=2) as a batched transposed GEMM
#   y[n, (kd,c,kh,kw), p] = sum_ci W_t[(kd,c,kh,kw), ci] * x[n, ci, p] + b[c]
# Row dim (8*C_up) on sublanes, flattened spatial p on lanes (lane-dense).
# ---------------------------------------------------------------------------
def _upsample_kernel(x_ref, w_ref, b_ref, o_ref):
    acc = jnp.dot(w_ref[...], x_ref[0].astype(jnp.bfloat16),
                  preferred_element_type=jnp.float32)
    o_ref[0] = (acc + b_ref[...]).astype(o_ref.dtype)


def _pick_tile_p(P, C_in, R):
    # bytes per lane, double-buffered: f32 input rows + bf16 output rows.
    per_lane = 2 * (4 * C_in + 2 * R)
    t = (_VMEM_BUDGET // per_lane) // 128 * 128
    if t >= P or P <= 128:
        return P                      # full-extent block (always legal)
    return max(t, 128)                # 128-lane-aligned -> unmasked stores


def upsample_gemm(x3, w_t, b_col):
    N, C_in, P = x3.shape
    R = w_t.shape[0]
    tile_p = _pick_tile_p(P, C_in, R)
    return pl.pallas_call(
        _upsample_kernel,
        out_shape=jax.ShapeDtypeStruct((N, R, P), jnp.bfloat16),
        grid_spec=pltpu.PrefetchScalarGridSpec(
            num_scalar_prefetch=0,
            grid=(N, pl.cdiv(P, tile_p)),
            in_specs=[
                pl.BlockSpec((1, C_in, tile_p), lambda n, t: (n, 0, t)),
                pl.BlockSpec((R, C_in), lambda n, t: (0, 0)),   # resident weight
                pl.BlockSpec((R, 1), lambda n, t: (0, 0)),      # resident bias
            ],
            out_specs=pl.BlockSpec((1, R, tile_p), lambda n, t: (n, 0, t)),
        ),
        compiler_params=pltpu.CompilerParams(
            dimension_semantics=("parallel", "parallel"),
            vmem_limit_bytes=_VMEM_LIMIT,
        ),
    )(x3, w_t, b_col)


# ---------------------------------------------------------------------------
# Kernel 2: Conv3d(3x3x3, pad=1) + ReLU with fused concat / zero-padding.
# TD output depth planes per grid step; up & skip enter separately; per-kw
# GEMMs of K = 9*C_src accumulated in f32; bias + ReLU fused; lane-dense store.
# ---------------------------------------------------------------------------
def _shift_lanes(x, s):
    """y[..., p] = x[..., p + s] when 0 <= p + s < L, else 0 (static s)."""
    if s == 0:
        return x
    C, L = x.shape
    z = jnp.zeros((C, abs(s)), x.dtype)
    if s > 0:
        return jnp.concatenate([x[:, s:], z], axis=1)
    return jnp.concatenate([z, x[:, :L + s]], axis=1)


def _conv3x3x3_kernel(up_m, up_lo, up_hi, sk_m, sk_lo, sk_hi,
                      wu_ref, ws_ref, b_ref, o_ref, *, TD, H2, W2):
    H2W2 = H2 * W2
    C_up = up_m.shape[2]
    C_sk = sk_m.shape[2]
    gd = pl.program_id(1)
    last = pl.num_programs(1) - 1

    # Broadcastable (1, H2W2) column masks for the W boundary of the 3x3x3 conv.
    col = lax.broadcasted_iota(jnp.int32, (1, H2W2), 1) % W2
    mask_l = col != 0             # zero kw==0 contributions at w == 0
    mask_r = col != (W2 - 1)      # zero kw==2 contributions at w == W2-1

    # D boundary: the clamped halo plane must contribute zero on the first /
    # last depth block.
    lo_scale = (gd > 0).astype(jnp.bfloat16)
    hi_scale = (gd < last).astype(jnp.bfloat16)

    def plane(m_ref, lo_ref, hi_ref, dd, kd):
        r = dd + kd - 1           # static
        if r == -1:
            return lo_ref[0, 0].astype(jnp.bfloat16) * lo_scale
        if r == TD:
            return hi_ref[0, 0].astype(jnp.bfloat16) * hi_scale
        return m_ref[0, r].astype(jnp.bfloat16)

    for dd in range(TD):
        pu = [plane(up_m, up_lo, up_hi, dd, kd) for kd in range(3)]
        ps = [plane(sk_m, sk_lo, sk_hi, dd, kd) for kd in range(3)]
        acc = jnp.zeros(o_ref.shape[2:], jnp.float32)
        for kw in range(3):
            taps_u, taps_s = [], []
            for kd in range(3):
                for kh in range(3):
                    s = (kh - 1) * W2 + (kw - 1)
                    taps_u.append(_shift_lanes(pu[kd], s))
                    taps_s.append(_shift_lanes(ps[kd], s))
            gu = jnp.concatenate(taps_u, axis=0)          # (9*C_up, H2W2) bf16
            gs = jnp.concatenate(taps_s, axis=0)          # (9*C_sk, H2W2) bf16
            if kw == 0:
                gu = jnp.where(mask_l, gu, 0)
                gs = jnp.where(mask_l, gs, 0)
            elif kw == 2:
                gu = jnp.where(mask_r, gu, 0)
                gs = jnp.where(mask_r, gs, 0)
            acc = acc + jnp.dot(wu_ref[:, kw * 9 * C_up:(kw + 1) * 9 * C_up], gu,
                                preferred_element_type=jnp.float32)
            acc = acc + jnp.dot(ws_ref[:, kw * 9 * C_sk:(kw + 1) * 9 * C_sk], gs,
                                preferred_element_type=jnp.float32)
        o_ref[0, dd] = jnp.maximum(acc + b_ref[...], 0.0)


def _pick_td(D2, C_up, C_sk, C_out, H2W2):
    for td in (8, 4, 2, 1):
        if D2 % td != 0:
            continue
        io = 2 * (td + 2) * (C_up + C_sk) * H2W2 * 2      # bf16 inputs, double-buffered
        io += 2 * td * C_out * H2W2 * 4                   # f32 output, double-buffered
        w = 2 * 27 * (C_up + C_sk) * C_out * 2 + 2 * C_out * 4
        tmp = 3 * 9 * (C_up + C_sk) * H2W2 * 2 + 2 * C_out * H2W2 * 4
        if io + w + tmp <= _VMEM_BUDGET:
            return td
    return 1


def conv3x3x3_relu(up_l, skip_l, w_u_t, w_s_t, b_col, *, D2, H2, W2):
    N, _, C_up, H2W2 = up_l.shape
    C_sk = skip_l.shape[2]
    C_out = w_u_t.shape[0]
    TD = _pick_td(D2, C_up, C_sk, C_out, H2W2)

    main_map = lambda n, g: (n, g, 0, 0)
    lo_map = lambda n, g: (n, jnp.maximum(g * TD - 1, 0), 0, 0)
    hi_map = lambda n, g: (n, jnp.minimum(g * TD + TD, D2 - 1), 0, 0)
    res_map = lambda n, g: (0, 0)

    kernel = functools.partial(_conv3x3x3_kernel, TD=TD, H2=H2, W2=W2)
    return pl.pallas_call(
        kernel,
        out_shape=jax.ShapeDtypeStruct((N, D2, C_out, H2W2), jnp.float32),
        grid_spec=pltpu.PrefetchScalarGridSpec(
            num_scalar_prefetch=0,
            grid=(N, D2 // TD),
            in_specs=[
                pl.BlockSpec((1, TD, C_up, H2W2), main_map),   # up: main TD planes
                pl.BlockSpec((1, 1, C_up, H2W2), lo_map),      # up: d0-1 halo
                pl.BlockSpec((1, 1, C_up, H2W2), hi_map),      # up: d0+TD halo
                pl.BlockSpec((1, TD, C_sk, H2W2), main_map),   # skip: main TD planes
                pl.BlockSpec((1, 1, C_sk, H2W2), lo_map),      # skip: d0-1 halo
                pl.BlockSpec((1, 1, C_sk, H2W2), hi_map),      # skip: d0+TD halo
                pl.BlockSpec((C_out, 27 * C_up), res_map),     # resident weight (up part)
                pl.BlockSpec((C_out, 27 * C_sk), res_map),     # resident weight (skip part)
                pl.BlockSpec((C_out, 1), res_map),             # resident bias
            ],
            out_specs=pl.BlockSpec((1, TD, C_out, H2W2), main_map),
        ),
        compiler_params=pltpu.CompilerParams(
            dimension_semantics=("parallel", "parallel"),
            vmem_limit_bytes=_VMEM_LIMIT,
        ),
    )(up_l, up_l, up_l, skip_l, skip_l, skip_l, w_u_t, w_s_t, b_col)


# ---------------------------------------------------------------------------
# Parameters (deterministic synthetic init, PyTorch shapes)
# ---------------------------------------------------------------------------
def init_params(key, in_channels, skip_channels, out_channels):
    k1, k2, k3, k4 = jax.random.split(key, 4)
    # ConvTranspose3d(in, in, kernel=2, stride=2): weight (in, in, 2, 2, 2)
    w_up = jax.random.normal(k1, (in_channels, in_channels, 2, 2, 2), jnp.float32) * 0.1
    b_up = jax.random.normal(k2, (in_channels,), jnp.float32) * 0.1
    # Conv3d(in+skip, out, kernel=3, padding=1): weight (out, in+skip, 3, 3, 3)
    w_conv = (
        jax.random.normal(
            k3, (out_channels, in_channels + skip_channels, 3, 3, 3), jnp.float32
        )
        * 0.05
    )
    b_conv = jax.random.normal(k4, (out_channels,), jnp.float32) * 0.05
    return dict(w_up=w_up, b_up=b_up, w_conv=w_conv, b_conv=b_conv)


# ---------------------------------------------------------------------------
# Forward pass (matches MultiScaleFusion.forward), NCDHW in / NCDHW out
# ---------------------------------------------------------------------------
def multi_scale_fusion(params, x, skip):
    N, C_in, D, H, W = x.shape
    _, C_skip, D2, H2, W2 = skip.shape
    w_up, b_up = params["w_up"], params["b_up"]
    w_conv, b_conv = params["w_conv"], params["b_conv"]
    C_up = w_up.shape[1]
    C_out = w_conv.shape[0]
    DHW = D * H * W

    # ---- ConvTranspose3d(k=2, s=2): one tiled batched GEMM (bf16 output) ----
    # rows ordered (kd, c, kh, kw) so the scatter below is a pure reshape+transpose
    w_up_t = (jnp.transpose(w_up, (2, 1, 3, 4, 0))
              .reshape(8 * C_up, C_in).astype(jnp.bfloat16))
    b_up_col = jnp.broadcast_to(
        b_up[None, :, None, None], (2, C_up, 2, 2)
    ).reshape(8 * C_up, 1)
    x3 = x.reshape(N, C_in, DHW)                                  # NCDHW, no transpose
    y = upsample_gemm(x3, w_up_t, b_up_col)                       # (N, 8*C_up, DHW) bf16

    # TODO(synk): the 8-phase spatial interleave stays XLA glue.
    up_l = jnp.transpose(
        y.reshape(N, 2, C_up, 2, 2, D, H, W), (0, 5, 1, 2, 6, 3, 7, 4)
    ).reshape(N, D2, C_up, H2 * W2)                               # bf16, depth-major

    skip_l = (jnp.transpose(skip, (0, 2, 1, 3, 4))
              .reshape(N, D2, C_skip, H2 * W2).astype(jnp.bfloat16))

    # ---- Conv3d(3x3x3, pad=1) + ReLU: fused concat/pad, per-kw GEMMs ----
    # weight columns ordered (kw, kd, kh, c), split by source channel range
    w_u_t = (jnp.transpose(w_conv[:, :C_up], (0, 4, 2, 3, 1))
             .reshape(C_out, 27 * C_up).astype(jnp.bfloat16))
    w_s_t = (jnp.transpose(w_conv[:, C_up:], (0, 4, 2, 3, 1))
             .reshape(C_out, 27 * C_skip).astype(jnp.bfloat16))
    b_col = b_conv.reshape(C_out, 1)

    o = conv3x3x3_relu(up_l, skip_l, w_u_t, w_s_t, b_col, D2=D2, H2=H2, W2=W2)
    return jnp.transpose(o.reshape(N, D2, C_out, H2, W2), (0, 2, 1, 3, 4))


# ---------------------------------------------------------------------------
# Pure-XLA reference (numerical sanity check)
# ---------------------------------------------------------------------------
def reference(params, x, skip):
    w_up, b_up = params["w_up"], params["b_up"]
    w_conv, b_conv = params["w_conv"], params["b_conv"]
    # ConvTranspose3d(s=2, k=2, pad=0) == conv with lhs_dilation=2,
    # spatially flipped weight with (in,out) swapped, padding k-1 = 1.
    w_t = jnp.flip(jnp.transpose(w_up, (1, 0, 2, 3, 4)), axis=(2, 3, 4))
    dn1 = jax.lax.conv_dimension_numbers(x.shape, w_t.shape, ("NCDHW", "OIDHW", "NCDHW"))
    up = jax.lax.conv_general_dilated(
        x, w_t, window_strides=(1, 1, 1), padding=((1, 1),) * 3,
        lhs_dilation=(2, 2, 2), dimension_numbers=dn1,
    ) + b_up.reshape(1, -1, 1, 1, 1)
    cat = jnp.concatenate([up, skip], axis=1)
    dn2 = jax.lax.conv_dimension_numbers(cat.shape, w_conv.shape, ("NCDHW", "OIDHW", "NCDHW"))
    out = jax.lax.conv_general_dilated(
        cat, w_conv, window_strides=(1, 1, 1), padding=((1, 1),) * 3,
        dimension_numbers=dn2,
    ) + b_conv.reshape(1, -1, 1, 1, 1)
    return jax.nn.relu(out)


if __name__ == "__main__":
    key = jax.random.PRNGKey(0)
    kp, kx, ks = jax.random.split(key, 3)

    in_channels, skip_channels, out_channels = 4, 4, 8
    N, D, H, W = 2, 4, 4, 4

    params = init_params(kp, in_channels, skip_channels, out_channels)
    x = jax.random.normal(kx, (N, in_channels, D, H, W), jnp.float32)
    skip = jax.random.normal(ks, (N, skip_channels, 2 * D, 2 * H, 2 * W), jnp.float32)

    out = multi_scale_fusion(params, x, skip)
    out = jax.block_until_ready(out)

    assert out.shape == (N, out_channels, 2 * D, 2 * H, 2 * W), out.shape
    ref = jax.block_until_ready(reference(params, x, skip))
    max_err = float(jnp.max(jnp.abs(out - ref)))
    if max_err > 2e-2:
        raise AssertionError(f"mismatch vs reference: max abs err = {max_err}")

    print("KERNEL_OK")
</pallas_src>

<mosaic_0001>
module attributes {stable_mosaic.version = 11 : i64} {
  func.func @_upsample_kernel(%arg0: i32, %arg1: i32, %arg2: memref<1x4x64xf32, #tpu.memory_space<vmem>>, %arg3: memref<32x4xbf16, #tpu.memory_space<vmem>>, %arg4: memref<32x1xf32, #tpu.memory_space<vmem>>, %arg5: memref<1x32x64xbf16, #tpu.memory_space<vmem>>) attributes {dimension_semantics = [#tpu.dimension_semantics<parallel>, #tpu.dimension_semantics<parallel>], iteration_bounds = array<i64: 2, 1>, scalar_prefetch = 0 : i64, scratch_operands = 0 : i64, tpu.core_type = #tpu.core_type<tc>, window_params = [{transform_indices = @transform_0, window_bounds = array<i64: 1, 4, 64>}, {pipeline_mode = #tpu.pipeline_mode<synchronous>, transform_indices = @transform_1, window_bounds = array<i64: 32, 4>}, {pipeline_mode = #tpu.pipeline_mode<synchronous>, transform_indices = @transform_2, window_bounds = array<i64: 32, 1>}, {transform_indices = @transform_3, window_bounds = array<i64: 1, 32, 64>}]} {
    %c0 = arith.constant 0 : index
    %c0_0 = arith.constant 0 : index
    %0 = vector.load %arg3[%c0, %c0_0] : memref<32x4xbf16, #tpu.memory_space<vmem>>, vector<32x4xbf16>
    %c0_1 = arith.constant 0 : index
    %c0_2 = arith.constant 0 : index
    %c0_3 = arith.constant 0 : index
    %1 = vector.load %arg2[%c0_1, %c0_2, %c0_3] : memref<1x4x64xf32, #tpu.memory_space<vmem>>, vector<1x4x64xf32>
    %2 = vector.shape_cast %1 : vector<1x4x64xf32> to vector<4x64xf32>
    %3 = arith.truncf %2 : vector<4x64xf32> to vector<4x64xbf16>
    %cst = arith.constant dense<0.000000e+00> : vector<32x64xf32>
    %4 = tpu.matmul %0, %3, %cst {dimension_numbers = #tpu.dot_dimension_numbers<[1], [0], [0], [1], [0, 0, 1, 1], [], []>} : vector<32x4xbf16>, vector<4x64xbf16>, vector<32x64xf32> -> vector<32x64xf32>
    %c0_4 = arith.constant 0 : index
    %c0_5 = arith.constant 0 : index
    %5 = vector.load %arg4[%c0_4, %c0_5] : memref<32x1xf32, #tpu.memory_space<vmem>>, vector<32x1xf32>
    %6 = vector.broadcast %5 : vector<32x1xf32> to vector<32x64xf32>
    %7 = arith.addf %4, %6 : vector<32x64xf32>
    %8 = arith.truncf %7 : vector<32x64xf32> to vector<32x64xbf16>
    %c0_6 = arith.constant 0 : index
    %c0_7 = arith.constant 0 : index
    %c0_8 = arith.constant 0 : index
    %9 = vector.load %arg5[%c0_6, %c0_7, %c0_8] : memref<1x32x64xbf16, #tpu.memory_space<vmem>>, vector<1x32x64xbf16>
    %10 = vector.shape_cast %9 : vector<1x32x64xbf16> to vector<32x64xbf16>
    %11 = vector.shape_cast %8 : vector<32x64xbf16> to vector<1x32x64xbf16>
    tpu.vector_store %arg5[%c0_6, %c0_7, %c0_8], %11 {strides = array<i32>} : memref<1x32x64xbf16, #tpu.memory_space<vmem>>, vector<1x32x64xbf16>,
    return
  }
  func.func @transform_0(%arg0: i32, %arg1: i32) -> (i32, i32, i32) {
    %c0_i32 = arith.constant 0 : i32
    %c0_i32_0 = arith.constant 0 : i32
    return %arg0, %c0_i32, %arg1 : i32, i32, i32
  }
  func.func @transform_1(%arg0: i32, %arg1: i32) -> (i32, i32) {
    %c0_i32 = arith.constant 0 : i32
    %c0_i32_0 = arith.constant 0 : i32
    %c0_i32_1 = arith.constant 0 : i32
    return %c0_i32, %c0_i32_0 : i32, i32
  }
  func.func @transform_2(%arg0: i32, %arg1: i32) -> (i32, i32) {
    %c0_i32 = arith.constant 0 : i32
    %c0_i32_0 = arith.constant 0 : i32
    %c0_i32_1 = arith.constant 0 : i32
    return %c0_i32, %c0_i32_0 : i32, i32
  }
  func.func @transform_3(%arg0: i32, %arg1: i32) -> (i32, i32, i32) {
    %c0_i32 = arith.constant 0 : i32
    %c0_i32_0 = arith.constant 0 : i32
    return %arg0, %c0_i32, %arg1 : i32, i32, i32
  }
}

</mosaic_0001>

<llo_original>
// kernel: tpu_custom_call.1
$region0: #{tpu_custom_call.1}
  #allocation0 [shape = 'u32[]', space=smem, size = 0x4, offset = 0x4, fixed_abs, tag = 'smem constant byte address 0x4 - core index']
  #allocation1 [shape = 'u32[144,128]{1,0:T(1,128)}', space=vmem, size = 0x12000, scoped, tag = 'internal scratch']
  %s0 = inlined_call_operand.vmem [shape: f32[2,4,64], index: 0, kind: input, shape index: {}]
  %s1 = inlined_call_operand.vmem [shape: bf16[32,4], index: 1, kind: input, shape index: {}]
  %s2 = inlined_call_operand.vmem [shape: f32[32,1], index: 2, kind: input, shape index: {}]
  %s3 = inlined_call_operand.hbm [shape: bf16[2,32,64], index: 3, kind: output, shape index: {}]
  %s4 = sld [smem:[#allocation0]]
  $region45: #{tpu_custom_call.1} parent=0
    _
  %s6 = ssub.s32 1, %s4
  %s7 = scalar_select 0, %s6, %s4
  $region1: #{tpu_custom_call.1} parent=0
    #allocation2 [shape = 'u8[16384]{0}', space=vmem, size = 0x4000, scoped, tag = 'output window, operand 0']
    #allocation3 [shape = 's32[2]{0}', space=sflag, size = 0x8, scoped, tag = 'scoped memory for tpu_custom_call.1']
    %8 = vsyncpa [#allocation3], 0
    %s9 = scalar_lea.sflag [#allocation3], 1
    %10 = vsyncpa %s9, 0
    loop: start=0, step=1, limit=4
    $region2: #{tpu_custom_call.1} parent=1 // loop_pre_header
      _
    $region3: #{tpu_custom_call.1} parent=1 // loop_header
      %s12 = sphi 0, %s16
      %p13 = scmp.ge.s32.totalorder %s12, 4
      %s19 = sphi 0, %s31
      %s20 = sphi 0, %s27
      %s21 = sphi 0, %s19
      %s22 = sphi 0, %s20
      %s23 = sphi 0, %s21
      %s24 = sphi 0, %s22
      %s36 = sphi 0, %s38
      %s39 = sphi 0, %s36
      %s40 = sphi 0, %s39
      %s56 = sphi 0, %s40
      %s60 = sphi 0, %s60
      %s62 = sphi 0, %s60
      %s63 = sphi 0, %s62
      %s77 = sphi 0, %s63
      %s81 = sphi 0, %s81
      %s83 = sphi 0, %s81
      %s84 = sphi 0, %s83
      %s98 = sphi 0, %s84
      %s106 = sphi 0, %s108
      %s109 = sphi 0, %s106
      %s110 = sphi 0, %s109
      %s126 = sphi 0, %s110
    $region4: #{tpu_custom_call.1} parent=1 // loop_header_branch
      %15 = sbr.rel (%p13) target = $region8
    $region5: #{tpu_custom_call.1} parent=1 // loop_body
      %s17 = ssub.s32 %s12, 1
      %s18 = ssub.s32 %s12, 2
      %s25 = sadd.s32 1, %s20
      %p26 = scmp.ge.s32.totalorder %s25, 1
      %s27 = scalar_select %p26, 0, %s25
      %s28 = sadd.s32 1, %s19
      %s29 = scalar_select %p26, %s28, %s19
      %p30 = scmp.ge.s32.totalorder %s29, 2
      %s31 = scalar_select %p30, 0, %s29
      %s32 = ssub.s32 %s19, %s31
      %s33 = ssub.s32 %s20, %s27
      %s34 = sor.u32 %s32, %s33
      %p35 = scmp.eq.s32.totalorder %s34, 0
      %s37 = sadd.s32 %s36, 1
      %s38 = scalar_select %p35, %s36, %s37
      %p41 = pneg %p35
      %p42 = scmp.eq.s32.totalorder %s12, 1
      %p43 = por %p41, %p42
      %p44 = scmp.ne.s32.totalorder %s36, %s39
      %p45 = scmp.eq.s32.totalorder %s12, 0
      %p46 = por %p44, %p45
      %p47 = scmp.ne.s32.totalorder %s36, %s39
      %p48 = scmp.eq.s32.totalorder %s17, 1
      %p49 = por %p47, %p48
      %p50 = scmp.ne.s32.totalorder %s39, %s40
      %p51 = scmp.eq.s32.totalorder %s17, 0
      %p52 = por %p50, %p51
      %p53 = scmp.ne.s32.totalorder %s39, %s40
      %p54 = scmp.eq.s32.totalorder %s18, 1
      %p55 = por %p53, %p54
      %p57 = scmp.ne.s32.totalorder %s40, %s56
      %p58 = scmp.eq.s32.totalorder %s18, 0
      %p59 = por %p57, %p58
      %s61 = sadd.s32 %s60, 1
      %p64 = scmp.eq.s32.totalorder %s12, 1
      %p65 = scmp.ne.s32.totalorder %s60, %s62
      %p66 = scmp.eq.s32.totalorder %s12, 0
      %p67 = por %p65, %p66
      %p68 = scmp.ne.s32.totalorder %s60, %s62
      %p69 = scmp.eq.s32.totalorder %s17, 1
      %p70 = por %p68, %p69
      %p71 = scmp.ne.s32.totalorder %s62, %s63
      %p72 = scmp.eq.s32.totalorder %s17, 0
      %p73 = por %p71, %p72
      %p74 = scmp.ne.s32.totalorder %s62, %s63
      %p75 = scmp.eq.s32.totalorder %s18, 1
      %p76 = por %p74, %p75
      %p78 = scmp.ne.s32.totalorder %s63, %s77
      %p79 = scmp.eq.s32.totalorder %s18, 0
      %p80 = por %p78, %p79
      %s82 = sadd.s32 %s81, 1
      %p85 = scmp.eq.s32.totalorder %s12, 1
      %p86 = scmp.ne.s32.totalorder %s81, %s83
      %p87 = scmp.eq.s32.totalorder %s12, 0
      %p88 = por %p86, %p87
      %p89 = scmp.ne.s32.totalorder %s81, %s83
      %p90 = scmp.eq.s32.totalorder %s17, 1
      %p91 = por %p89, %p90
      %p92 = scmp.ne.s32.totalorder %s83, %s84
      %p93 = scmp.eq.s32.totalorder %s17, 0
      %p94 = por %p92, %p93
      %p95 = scmp.ne.s32.totalorder %s83, %s84
      %p96 = scmp.eq.s32.totalorder %s18, 1
      %p97 = por %p95, %p96
      %p99 = scmp.ne.s32.totalorder %s84, %s98
      %p100 = scmp.eq.s32.totalorder %s18, 0
      %p101 = por %p99, %p100
      %s102 = ssub.s32 %s19, %s31
      %s103 = ssub.s32 %s20, %s27
      %s104 = sor.u32 %s102, %s103
      %p105 = scmp.eq.s32.totalorder %s104, 0
      %s107 = sadd.s32 %s106, 1
      %s108 = scalar_select %p105, %s106, %s107
      %p111 = pneg %p105
      %p112 = scmp.eq.s32.totalorder %s12, 1
      %p113 = por %p111, %p112
      %p114 = scmp.ne.s32.totalorder %s106, %s109
      %p115 = scmp.eq.s32.totalorder %s12, 0
      %p116 = por %p114, %p115
      %p117 = scmp.ne.s32.totalorder %s106, %s109
      %p118 = scmp.eq.s32.totalorder %s17, 1
      %p119 = por %p117, %p118
      %p120 = scmp.ne.s32.totalorder %s109, %s110
      %p121 = scmp.eq.s32.totalorder %s17, 0
      %p122 = por %p120, %p121
      %p123 = scmp.ne.s32.totalorder %s109, %s110
      %p124 = scmp.eq.s32.totalorder %s18, 1
      %p125 = por %p123, %p124
      %p127 = scmp.ne.s32.totalorder %s110, %s126
      %p128 = scmp.eq.s32.totalorder %s18, 0
      %p129 = por %p127, %p128
      %p130 = scmp.le.s32.totalorder 1, %s12
      %p131 = scmp.lt.s32.totalorder %s12, 3
      %p132 = pnand %p130, %p131
      %p133 = pneg %p132
      // Predicated region
      $region9: #{tpu_custom_call.1} parent=5 // pred_check
        _
      $region10: #{tpu_custom_call.1} parent=5 // pred_check_branch
        %135 = sbr.rel (%p132) target = $region12
      $region11: #{tpu_custom_call.1} parent=5 // pred_region
        %s136 = ssub.s32 %s12, 1
        // Predicated region
        $region13: #{tpu_custom_call.1} parent=11 // pred_check
          %p137 = pneg %p73
        $region14: #{tpu_custom_call.1} parent=11 // pred_check_branch
          %139 = sbr.rel (%p137) target = $region16
        $region15: #{tpu_custom_call.1} parent=11 // pred_region
          _
        $region16: #{tpu_custom_call.1} parent=11 // pred_fallthru
          _
        // Predicated region
        $region17: #{tpu_custom_call.1} parent=11 // pred_check
          %p140 = pneg %p94
        $region18: #{tpu_custom_call.1} parent=11 // pred_check_branch
          %142 = sbr.rel (%p140) target = $region20
        $region19: #{tpu_custom_call.1} parent=11 // pred_region
          _
        $region20: #{tpu_custom_call.1} parent=11 // pred_fallthru
          _
      $region12: #{tpu_custom_call.1} parent=5 // pred_fallthru
        _
      %p143 = scmp.lt.s32.totalorder %s12, 2
      // Predicated region
      $region21: #{tpu_custom_call.1} parent=5 // pred_check
        %p144 = pneg %p143
      $region22: #{tpu_custom_call.1} parent=5 // pred_check_branch
        %146 = sbr.rel (%p144) target = $region24
      $region23: #{tpu_custom_call.1} parent=5 // pred_region
        // Predicated region
        $region25: #{tpu_custom_call.1} parent=23 // pred_check
          %p147 = pneg %p46
        $region26: #{tpu_custom_call.1} parent=23 // pred_check_branch
          %149 = sbr.rel (%p147) target = $region28
        $region27: #{tpu_custom_call.1} parent=23 // pred_region
          %p150 = scmp.lt.s32.totalorder %s19, 1
          %s151 = scalar_select %p150, %s19, 1
          %p152 = scmp.lt.s32.totalorder %s20, 0
          %s153 = scalar_select %p152, %s20, 0
          %s154 = sadd.s32 %s153, %s151
          %s155 = smul.addr %s154, 4
          %s156 = scalar_lea.vmem %s0, %s155
        $region28: #{tpu_custom_call.1} parent=23 // pred_fallthru
          _
      $region24: #{tpu_custom_call.1} parent=5 // pred_fallthru
        _
      %p157 = scmp.le.s32.totalorder 1, %s12
      %p158 = scmp.lt.s32.totalorder %s12, 3
      %p159 = pnand %p157, %p158
      %p160 = pneg %p159
      // Predicated region
      $region29: #{tpu_custom_call.1} parent=5 // pred_check
        _
      $region30: #{tpu_custom_call.1} parent=5 // pred_check_branch
        %162 = sbr.rel (%p159) target = $region32
      $region31: #{tpu_custom_call.1} parent=5 // pred_region
        %s163 = ssub.s32 %s12, 1
        %p164 = scmp.lt.s32.totalorder %s21, 1
        %s165 = scalar_select %p164, %s21, 1
        %p166 = scmp.lt.s32.totalorder %s22, 0
        %s167 = scalar_select %p166, %s22, 0
        %s168 = sadd.s32 %s167, %s165
        %s169 = smul.addr %s168, 4
        %s170 = scalar_lea.vmem %s0, %s169
        %p171 = pneg %p52
        %p172 = pneg %p49
        %p173 = pneg %p73
        %p174 = pneg %p70
        %p175 = pneg %p94
        %p176 = pneg %p91
        %p177 = pneg %p122
        %p178 = pneg %p119
        %s179 = sand.u32 %s109, 1
        %s180 = scalar_lea.sflag [#allocation3], %s179
        %s181 = sand.u32 %s109, 1
        %s182 = smul.addr %s181, 16
        %s183 = scalar_lea.vmem [#allocation2], %s182
        %p184 = scmp.lt.s32.totalorder %s21, 1
        %s185 = scalar_select %p184, %s21, 1
        %p186 = scmp.lt.s32.totalorder %s22, 0
        %s187 = scalar_select %p186, %s22, 0
        %s188 = sadd.s32 %s187, %s185
        %s189 = smul.addr %s188, 4
        %s190 = scalar_lea.vmem %s0, %s189
        %v192 = vld [vmem:[%s1] sm:$0xf]
        %v193 = vld [vmem:[%s1 + $0x4] sm:$0xf]
        %v194 = vld [vmem:[%s1 + $0x8] sm:$0xf]
        %v195 = vld [vmem:[%s1 + $0xc] sm:$0xf]
        %v196 = vld [vmem:[%s190] sm:$0xf]
        %v197 = vpack.c.bf16 %v196, %v196
        %v198 = vld [vmem:[%s2] sm:$0xff]
        %v199 = vld [vmem:[%s2 + $0x8] sm:$0xff]
        %v200 = vld [vmem:[%s2 + $0x10] sm:$0xff]
        %v201 = vld [vmem:[%s2 + $0x18] sm:$0xff]
        %203 = vset.pattern.permute.xlu0 0
        %204 = vperm.xlu0 %203, %v198
        %v205 = vpop.permute.xlu0 %204
        %208 = vset.pattern.permute.xlu0 0
        %209 = vperm.xlu0 %208, %v199
        %v210 = vpop.permute.xlu0 %209
        %213 = vset.pattern.permute.xlu0 0
        %214 = vperm.xlu0 %213, %v200
        %v215 = vpop.permute.xlu0 %214
        %218 = vset.pattern.permute.xlu0 0
        %219 = vperm.xlu0 %218, %v201
        %v220 = vpop.permute.xlu0 %219
        %v226 = vunpack.c.l.b16 %v192
        %v227 = vunpack.c.l.b16 %v193
        %v228 = vunpack.c.l.b16 %v194
        %v229 = vunpack.c.l.b16 %v195
        %v230 = vpack.c.b16 %v227, %v226
        %v231 = vpack.c.b16 %v229, %v228
        %vm232 = vcmask 31744
        %v234 = vsel %vm232, %v230, 0
        %v237 = vsel %vm232, %v231, 0
        %vm239 = vcmask 1041408
        %v241 = vsel %vm239, %v197, 0
        %243 = vmatprep.subr.bf16.mxu0 0
        %244 = vmatpush1.bf16.msra.mxu0 %v241
        %245 = vmatprep.subr.bf16.mxu0 0
        %246 = vmatpush1.bf16.msra.mxu0 0
        %247 = vmatprep.subr.bf16.mxu0 0
        %248 = vmatpush1.bf16.msra.mxu0 0
        %249 = vmatprep.subr.bf16.mxu0 0
        %250 = vmatpush1.bf16.msra.mxu0 0
        %251 = vmatprep.subr.bf16.mxu0 0
        %252 = vmatpush1.bf16.msra.mxu0 0
        %253 = vmatprep.subr.bf16.mxu0 0
        %254 = vmatpush1.bf16.msra.mxu0 0
        %255 = vmatprep.subr.bf16.mxu0 0
        %256 = vmatpush1.bf16.msra.mxu0 0
        %257 = vmatprep.subr.bf16.mxu0 0
        %258 = vmatpush1.bf16.msra.mxu0 0
        %259 = vmatprep.subr.bf16.mxu0 0
        %260 = vmatpush1.bf16.msra.mxu0 0
        %261 = vmatprep.subr.bf16.mxu0 0
        %262 = vmatpush1.bf16.msra.mxu0 0
        %263 = vmatprep.subr.bf16.mxu0 0
        %264 = vmatpush1.bf16.msra.mxu0 0
        %265 = vmatprep.subr.bf16.mxu0 0
        %266 = vmatpush1.bf16.msra.mxu0 0
        %267 = vmatprep.subr.bf16.mxu0 0
        %268 = vmatpush1.bf16.msra.mxu0 0
        %269 = vmatprep.subr.bf16.mxu0 0
        %270 = vmatpush1.bf16.msra.mxu0 0
        %271 = vmatprep.subr.bf16.mxu0 0
        %272 = vmatpush1.bf16.msra.mxu0 0
        %273 = vmatprep.subr.bf16.mxu0 0
        %274 = vmatpush1.bf16.msra.mxu0 0
        %275 = vmatprep.mubr.bf16.mxu0 0
        %276 = vmatmul.mubr.bf16.gmra.mrb[0].mxu0 %v234
        %v277 = vpop.f32.mrb[0].mxu0
        %v278 = vadd.f32 %v205, %v277
        %v279 = vpop.f32.mrb[0].mxu0
        %v280 = vpop.f32.mrb[0].mxu0
        %v281 = vadd.f32 %v210, %v280
        %v282 = vpop.f32.mrb[0].mxu0
        %283 = vmatprep.mubr.bf16.mxu0 0
        %284 = vmatmul.mubr.bf16.gmra.mrb[0].mxu0 %v237
        %v285 = vpop.f32.mrb[0].mxu0
        %v286 = vadd.f32 %v215, %v285
        %v287 = vpop.f32.mrb[0].mxu0
        %v288 = vpop.f32.mrb[0].mxu0
        %v289 = vadd.f32 %v220, %v288
        %v290 = vpop.f32.mrb[0].mxu0
        %291 = vdwg.mxu0
        %v292 = vpack.c.bf16 %v281, %v278
        %v293 = vpack.c.bf16 %v289, %v286
        %v296 = vunpack.c.l.b16 %v292
        %v297 = vunpack.c.h.b16 %v292
        %v298 = vunpack.c.l.b16 %v293
        %v299 = vunpack.c.h.b16 %v293
        %v300 = vpack.c.b16 %v296, %v296
        %v301 = vpack.c.b16 %v297, %v297
        %v302 = vpack.c.b16 %v298, %v298
        %v303 = vpack.c.b16 %v299, %v299
        %vm308 = vcmask 519168
        %309 = vst.msk [vmem:[%s183] sm:$0xf] %vm308, %v300
        %310 = vst.msk [vmem:[%s183 + $0x4] sm:$0xf] %vm308, %v301
        %311 = vst.msk [vmem:[%s183 + $0x8] sm:$0xf] %vm308, %v302
        %312 = vst.msk [vmem:[%s183 + $0xc] sm:$0xf] %vm308, %v303
        %s313 = sand.u32 %s109, 1
        %s314 = scalar_lea.sflag [#allocation3], %s313
        %s315 = sand.u32 %s109, 1
        %s316 = smul.addr %s315, 16
        %s317 = scalar_lea.vmem [#allocation2], %s316
        // Predicated region
        $region33: #{tpu_custom_call.1} parent=31 // pred_check
          %p318 = pneg %p119
        $region34: #{tpu_custom_call.1} parent=31 // pred_check_branch
          %320 = sbr.rel (%p318) target = $region36
        $region35: #{tpu_custom_call.1} parent=31 // pred_region
          %s322 = ssub.s32 256, 256
          %323 = vsyncadd %s314, %s322
          %s324 = smul.addr %s21, 4
          %s325 = sadd.s32 %s22, %s324
          %s326 = smul.addr %s325, 64
          %s327 = scalar_lea.hbm %s3, %s326
          %s328 = sshll.u32 %s317, 4
          %s329 = int_to_ptr.vmem [resolvable:$true] %s328
          %334 = dma.vmem_to_hbm [thread:$0]  %s329, 256, %s327, %s314, 64, 64, 4
        $region36: #{tpu_custom_call.1} parent=31 // pred_fallthru
          _
      $region32: #{tpu_custom_call.1} parent=5 // pred_fallthru
        _
      %p335 = scmp.le.s32.totalorder 2, %s12
      // Predicated region
      $region37: #{tpu_custom_call.1} parent=5 // pred_check
        %p336 = pneg %p335
      $region38: #{tpu_custom_call.1} parent=5 // pred_check_branch
        %338 = sbr.rel (%p336) target = $region40
      $region39: #{tpu_custom_call.1} parent=5 // pred_region
        %s339 = ssub.s32 %s12, 2
        // Predicated region
        $region41: #{tpu_custom_call.1} parent=39 // pred_check
          %p340 = pneg %p125
        $region42: #{tpu_custom_call.1} parent=39 // pred_check_branch
          %342 = sbr.rel (%p340) target = $region44
        $region43: #{tpu_custom_call.1} parent=39 // pred_region
          %s343 = sand.u32 %s110, 1
          %s344 = scalar_lea.sflag [#allocation3], %s343
          %s345 = sand.u32 %s110, 1
          %s346 = smul.addr %s345, 16
          %s347 = scalar_lea.vmem [#allocation2], %s346
          %348 = dma.done %s344, 256
        $region44: #{tpu_custom_call.1} parent=39 // pred_fallthru
          _
      $region40: #{tpu_custom_call.1} parent=5 // pred_fallthru
        _
    $region6: #{tpu_custom_call.1} parent=1 // loop_footer
      %s16 = sadd.s32 1, %s12
    $region7: #{tpu_custom_call.1} parent=1 // loop_footer_branch
      %11 = sbr.rel target = $region3
    $region8: #{tpu_custom_call.1} parent=1 // loop_exit
      _
    %349 = vsyncpa [#allocation3], 1
    %s350 = scalar_lea.sflag [#allocation3], 1
    %351 = vsyncpa %s350, 1

</llo_original>
